<compile_context>
chip_gen: v5e
topology: v5e:2x2
jax: 0.10.0
libtpu: 0.0.40
codegen_flags: <defaults>
</compile_context>

<pallas_src>
import jax
import jax.numpy as jnp
from jax import lax
from jax.experimental import pallas as pl
from jax.experimental.pallas import tpu as pltpu


def _round_up(n, m):
    return (n + m - 1) // m * m


def _make_kernel(img_h: int, use_mxu: bool):
    """Tile kernel for a lane-dense (N*C*H, W) layout.

    Each tile is a (tile_rows, W) slab holding whole images (tile_rows % img_h == 0),
    so the only per-tile state needed is the row-within-image position.
    """
    pow2 = (img_h & (img_h - 1)) == 0

    def h_taps(d):
        # up[r] = d[r-1] (zero on each image's first row),
        # dn[r] = d[r+1] (zero on each image's last row).
        R = d.shape[0]
        row = lax.broadcasted_iota(jnp.int32, (R, 1), 0)
        rin = (row & (img_h - 1)) if pow2 else (row % img_h)
        keep_up = (rin != 0).astype(jnp.float32)            # (R,1), lane-broadcast
        keep_dn = (rin != img_h - 1).astype(jnp.float32)
        up = pltpu.roll(d, 1, 0) * keep_up
        dn = pltpu.roll(d, R - 1, 0) * keep_dn
        h_sum = up + 2.0 * d + dn                           # rows [1, 2, 1]  -> Sobel A
        h_diff = up - dn                                    # rows [1, 0, -1] -> Sobel B
        return h_sum, h_diff

    if use_mxu:

        def kernel(x_ref, y_ref, mdiff_ref, msum_ref, out_ref):
            d = x_ref[...].astype(jnp.float32) - y_ref[...].astype(jnp.float32)
            h_sum, h_diff = h_taps(d)
            # Column stencils on the MXU; zero padding is encoded in the bands.
            g_a = jnp.dot(h_sum, mdiff_ref[...],
                          precision=lax.Precision.HIGHEST,
                          preferred_element_type=jnp.float32)
            g_b = jnp.dot(h_diff, msum_ref[...],
                          precision=lax.Precision.HIGHEST,
                          preferred_element_type=jnp.float32)
            out_ref[0, 0] = jnp.sum(jnp.abs(g_a) + jnp.abs(g_b))

    else:

        def kernel(x_ref, y_ref, out_ref):
            d = x_ref[...].astype(jnp.float32) - y_ref[...].astype(jnp.float32)
            W = d.shape[1]
            h_sum, h_diff = h_taps(d)
            lane = lax.broadcasted_iota(jnp.int32, (1, W), 1)
            keep_l = (lane != 0).astype(jnp.float32)        # (1,W), sublane-broadcast
            keep_r = (lane != W - 1).astype(jnp.float32)

            def left(z):    # z[:, j-1] with zero padding
                return pltpu.roll(z, 1, 1) * keep_l

            def right(z):   # z[:, j+1] with zero padding
                return pltpu.roll(z, W - 1, 1) * keep_r

            g_a = left(h_sum) - right(h_sum)                    # cols [1, 0, -1]
            g_b = left(h_diff) + 2.0 * h_diff + right(h_diff)   # cols [1, 2, 1]
            out_ref[0, 0] = jnp.sum(jnp.abs(g_a) + jnp.abs(g_b))

    return kernel


def _column_stencil_matrices(W):
    """(W, W) banded matrices so that z @ M applies the column stencil with zero pad."""
    k = jnp.arange(W)[:, None]
    j = jnp.arange(W)[None, :]
    lo = (k == j - 1).astype(jnp.float32)    # picks input[:, j-1]
    mid = (k == j).astype(jnp.float32)
    hi = (k == j + 1).astype(jnp.float32)    # picks input[:, j+1]
    m_diff = lo - hi                         # [1, 0, -1]
    m_sum = lo + 2.0 * mid + hi              # [1, 2, 1]
    return m_diff, m_sum


def _vmem_capacity_bytes():
    try:
        return int(pltpu.get_tpu_info().vmem_capacity_bytes)
    except Exception:
        return 64 * 1024 * 1024              # conservative (v7x-sized) fallback


def _pick_images_per_tile(B, H, W, itemsize, budget_bytes, const_bytes):
    """Largest divisor tb of B whose (tb*H, W) block fits the VMEM budget and is
    sublane (8) aligned. Budget accounts for lane padding and the input dtype."""
    w_pad = _round_up(W, 128)

    def est(tb):                             # rough per-step VMEM footprint
        rows = _round_up(tb * H, 8)
        tile_in = rows * w_pad * itemsize
        tile_f32 = rows * w_pad * 4
        # 2 inputs x 2 pipeline buffers + ~6 live f32 temps + resident constants.
        return 4 * tile_in + 6 * tile_f32 + const_bytes

    divisors = [tb for tb in range(1, B + 1) if B % tb == 0 and (tb * H) % 8 == 0]
    fitting = [tb for tb in divisors if est(tb) <= budget_bytes]
    if fitting:
        return max(fitting)
    if divisors:
        return min(divisors)                 # smallest legal tile; may exceed soft budget
    # No 8-aligned divisor (e.g. B == 1 and H % 8 != 0): single full-array block.
    # TODO(synk): H-strip tiling with a 1-row halo for huge single images.
    return B


def gradient_loss(x, y, *, use_mxu=None, mxu_max_width=512, vmem_budget_bytes=None):
    """x, y: (N, C, H, W). Returns the scalar Gradient_Loss (float32)."""
    assert x.shape == y.shape and x.ndim == 4
    N, C, H, W = x.shape
    B = N * C

    # Lane-dense 2-D layout: rows = fused N*C*H axis, lanes = W (free reshape).
    # TODO(synk): for W < 128 a lanes=N*C layout would recover lane density;
    # current layout pads W to 128 lanes.
    xf = x.reshape(B * H, W)
    yf = y.reshape(B * H, W)

    if use_mxu is None:
        use_mxu = W <= mxu_max_width         # keep the (W, W) stencil constants small

    w_pad = _round_up(W, 128)
    const_bytes = 2 * 2 * W * w_pad * 4 if use_mxu else 0

    # Generation-aware VMEM limits (v7x: 64 MiB physical, v5e/v6e: 128 MiB).
    vmem_cap = _vmem_capacity_bytes()
    vmem_limit = max(32 * 1024 * 1024,
                     min(96 * 1024 * 1024, vmem_cap - 16 * 1024 * 1024))
    budget = vmem_budget_bytes if vmem_budget_bytes is not None else (7 * vmem_limit) // 10

    itemsize = max(x.dtype.itemsize, y.dtype.itemsize)
    tb = _pick_images_per_tile(B, H, W, itemsize, budget, const_bytes)
    tile_rows = tb * H
    num_tiles = B // tb
    # TODO(synk): relax the 'tb divides B' constraint with a cdiv grid + masked tail.

    in_specs = [
        pl.BlockSpec((tile_rows, W), lambda i: (i, 0)),
        pl.BlockSpec((tile_rows, W), lambda i: (i, 0)),
    ]
    operands = [xf, yf]
    if use_mxu:
        m_diff, m_sum = _column_stencil_matrices(W)
        in_specs += [
            pl.BlockSpec((W, W), lambda i: (0, 0)),    # resident (block index never changes)
            pl.BlockSpec((W, W), lambda i: (0, 0)),
        ]
        operands += [m_diff, m_sum]

    partials = pl.pallas_call(
        _make_kernel(H, use_mxu),
        out_shape=jax.ShapeDtypeStruct((num_tiles, 1), jnp.float32),
        grid=(num_tiles,),
        in_specs=in_specs,
        # One scalar partial per grid step -> no cross-step state, axis is parallel.
        out_specs=pl.BlockSpec((1, 1), lambda i: (i, 0),
                               memory_space=pltpu.MemorySpace.SMEM),
        compiler_params=pltpu.CompilerParams(
            dimension_semantics=("parallel",),
            vmem_limit_bytes=int(vmem_limit),
        ),
    )(*operands)

    # L1Loss(mean) on each gradient map, summed: (sum|gA| + sum|gB|) / (N*C*H*W).
    return jnp.sum(partials) / jnp.float32(N * C * H * W)


def _gradient_loss_ref(x, y):
    """Plain-JAX reference with identical math (verification only)."""
    a = ((1.0, 0.0, -1.0), (2.0, 0.0, -2.0), (1.0, 0.0, -1.0))
    b = ((1.0, 2.0, 1.0), (0.0, 0.0, 0.0), (-1.0, -2.0, -1.0))

    def dwconv(z, w):
        zp = jnp.pad(z, ((0, 0), (0, 0), (1, 1), (1, 1)))
        Nn, Cc, Hp, Wp = zp.shape
        Hh, Ww = Hp - 2, Wp - 2
        acc = jnp.zeros((Nn, Cc, Hh, Ww), jnp.float32)
        for ki in range(3):
            for kj in range(3):
                acc = acc + w[ki][kj] * zp[:, :, ki:ki + Hh, kj:kj + Ww]
        return acc

    x = x.astype(jnp.float32)
    y = y.astype(jnp.float32)
    l_h = jnp.mean(jnp.abs(dwconv(x, a) - dwconv(y, a)))
    l_v = jnp.mean(jnp.abs(dwconv(x, b) - dwconv(y, b)))
    return l_h + l_v


if __name__ == "__main__":
    key = jax.random.PRNGKey(0)
    kx, ky = jax.random.split(key)
    # Conv2d(3, 3, groups=3) -> channels must be 3.
    x = jax.random.normal(kx, (2, 3, 16, 16), dtype=jnp.float32)
    y = jax.random.normal(ky, (2, 3, 16, 16), dtype=jnp.float32)

    ref = _gradient_loss_ref(x, y)

    # Default: MXU column-stencil path, single tile.
    loss = gradient_loss(x, y)
    jax.block_until_ready(loss)
    assert jnp.allclose(loss, ref, rtol=1e-4, atol=1e-4), (loss, ref)

    # Force a multi-step parallel grid (per-program partial sums).
    loss_tiled = gradient_loss(x, y, vmem_budget_bytes=256 * 1024)
    jax.block_until_ready(loss_tiled)
    assert jnp.allclose(loss_tiled, ref, rtol=1e-4, atol=1e-4), (loss_tiled, ref)

    # Roll/mask fallback path (used for very wide images), also multi-tile.
    loss_roll = gradient_loss(x, y, use_mxu=False, vmem_budget_bytes=256 * 1024)
    jax.block_until_ready(loss_roll)
    assert jnp.allclose(loss_roll, ref, rtol=1e-5, atol=1e-5), (loss_roll, ref)

    print("KERNEL_OK")
</pallas_src>

<mosaic_0001>
module attributes {stable_mosaic.version = 11 : i64} {
  func.func @kernel(%arg0: i32, %arg1: memref<96x16xf32, #tpu.memory_space<vmem>>, %arg2: memref<96x16xf32, #tpu.memory_space<vmem>>, %arg3: memref<16x16xf32, #tpu.memory_space<vmem>>, %arg4: memref<16x16xf32, #tpu.memory_space<vmem>>, %arg5: memref<1x1xf32, #tpu.memory_space<smem>>) attributes {dimension_semantics = [#tpu.dimension_semantics<parallel>], iteration_bounds = array<i64: 1>, scalar_prefetch = 0 : i64, scratch_operands = 0 : i64, tpu.core_type = #tpu.core_type<tc>, window_params = [{transform_indices = @transform_0, window_bounds = array<i64: 96, 16>}, {transform_indices = @transform_1, window_bounds = array<i64: 96, 16>}, {pipeline_mode = #tpu.pipeline_mode<synchronous>, transform_indices = @transform_2, window_bounds = array<i64: 16, 16>}, {pipeline_mode = #tpu.pipeline_mode<synchronous>, transform_indices = @transform_3, window_bounds = array<i64: 16, 16>}, {transform_indices = @transform_4, window_bounds = array<i64: 1, 1>}]} {
    %c0 = arith.constant 0 : index
    %c0_0 = arith.constant 0 : index
    %0 = vector.load %arg1[%c0, %c0_0] : memref<96x16xf32, #tpu.memory_space<vmem>>, vector<96x16xf32>
    %c0_1 = arith.constant 0 : index
    %c0_2 = arith.constant 0 : index
    %1 = vector.load %arg2[%c0_1, %c0_2] : memref<96x16xf32, #tpu.memory_space<vmem>>, vector<96x16xf32>
    %2 = arith.subf %0, %1 : vector<96x16xf32>
    %3 = tpu.iota {dimensions = array<i32: 0>} : vector<96x1xi32>
    %c15_i32 = arith.constant 15 : i32
    %4 = vector.broadcast %c15_i32 : i32 to vector<96x1xi32>
    %5 = arith.andi %3, %4 : vector<96x1xi32>
    %c0_i32 = arith.constant 0 : i32
    %6 = vector.broadcast %c0_i32 : i32 to vector<96x1xi32>
    %7 = arith.cmpi ne, %5, %6 : vector<96x1xi32>
    %8 = arith.extui %7 : vector<96x1xi1> to vector<96x1xi32>
    %9 = arith.sitofp %8 : vector<96x1xi32> to vector<96x1xf32>
    %c15_i32_3 = arith.constant 15 : i32
    %10 = vector.broadcast %c15_i32_3 : i32 to vector<96x1xi32>
    %11 = arith.cmpi ne, %5, %10 : vector<96x1xi32>
    %12 = arith.extui %11 : vector<96x1xi1> to vector<96x1xi32>
    %13 = arith.sitofp %12 : vector<96x1xi32> to vector<96x1xf32>
    %c1_i32 = arith.constant 1 : i32
    %14 = tpu.dynamic_rotate %2 by %c1_i32 dim 0 : vector<96x16xf32>, i32 -> vector<96x16xf32>
    %15 = vector.broadcast %9 : vector<96x1xf32> to vector<96x16xf32>
    %16 = arith.mulf %14, %15 : vector<96x16xf32>
    %c95_i32 = arith.constant 95 : i32
    %17 = tpu.dynamic_rotate %2 by %c95_i32 dim 0 : vector<96x16xf32>, i32 -> vector<96x16xf32>
    %18 = vector.broadcast %13 : vector<96x1xf32> to vector<96x16xf32>
    %19 = arith.mulf %17, %18 : vector<96x16xf32>
    %cst = arith.constant 2.000000e+00 : f32
    %20 = vector.broadcast %cst : f32 to vector<96x16xf32>
    %21 = arith.mulf %20, %2 : vector<96x16xf32>
    %22 = arith.addf %16, %21 : vector<96x16xf32>
    %23 = arith.addf %22, %19 : vector<96x16xf32>
    %24 = arith.subf %16, %19 : vector<96x16xf32>
    %c0_4 = arith.constant 0 : index
    %c0_5 = arith.constant 0 : index
    %25 = vector.load %arg3[%c0_4, %c0_5] : memref<16x16xf32, #tpu.memory_space<vmem>>, vector<16x16xf32>
    %cst_6 = arith.constant dense<0.000000e+00> : vector<96x16xf32>
    %26 = tpu.matmul %23, %25, %cst_6 {dimension_numbers = #tpu.dot_dimension_numbers<[1], [0], [0], [1], [0, 0, 1, 1], [], []>, precision = #tpu.contract_precision<fp32>} : vector<96x16xf32>, vector<16x16xf32>, vector<96x16xf32> -> vector<96x16xf32>
    %c0_7 = arith.constant 0 : index
    %c0_8 = arith.constant 0 : index
    %27 = vector.load %arg4[%c0_7, %c0_8] : memref<16x16xf32, #tpu.memory_space<vmem>>, vector<16x16xf32>
    %cst_9 = arith.constant dense<0.000000e+00> : vector<96x16xf32>
    %28 = tpu.matmul %24, %27, %cst_9 {dimension_numbers = #tpu.dot_dimension_numbers<[1], [0], [0], [1], [0, 0, 1, 1], [], []>, precision = #tpu.contract_precision<fp32>} : vector<96x16xf32>, vector<16x16xf32>, vector<96x16xf32> -> vector<96x16xf32>
    %29 = math.absf %26 : vector<96x16xf32>
    %30 = math.absf %28 : vector<96x16xf32>
    %31 = arith.addf %29, %30 : vector<96x16xf32>
    %32 = vector.shape_cast %31 : vector<96x16xf32> to vector<1x96x16xf32>
    %cst_10 = arith.constant dense<0.000000e+00> : vector<1xf32>
    %33 = vector.multi_reduction <add>, %32, %cst_10 [1, 2] : vector<1x96x16xf32> to vector<1xf32>
    %34 = vector.shape_cast %33 : vector<1xf32> to vector<1x1x1xf32>
    %35 = vector.extract %34[0, 0, 0] : f32 from vector<1x1x1xf32>
    %c0_11 = arith.constant 0 : index
    %c0_12 = arith.constant 0 : index
    %36 = memref.load %arg5[%c0_11, %c0_12] : memref<1x1xf32, #tpu.memory_space<smem>>
    memref.store %35, %arg5[%c0_11, %c0_12] : memref<1x1xf32, #tpu.memory_space<smem>>
    return
  }
  func.func @transform_0(%arg0: i32) -> (i32, i32) {
    %c0_i32 = arith.constant 0 : i32
    %c0_i32_0 = arith.constant 0 : i32
    return %arg0, %c0_i32 : i32, i32
  }
  func.func @transform_1(%arg0: i32) -> (i32, i32) {
    %c0_i32 = arith.constant 0 : i32
    %c0_i32_0 = arith.constant 0 : i32
    return %arg0, %c0_i32 : i32, i32
  }
  func.func @transform_2(%arg0: i32) -> (i32, i32) {
    %c0_i32 = arith.constant 0 : i32
    %c0_i32_0 = arith.constant 0 : i32
    %c0_i32_1 = arith.constant 0 : i32
    return %c0_i32, %c0_i32_0 : i32, i32
  }
  func.func @transform_3(%arg0: i32) -> (i32, i32) {
    %c0_i32 = arith.constant 0 : i32
    %c0_i32_0 = arith.constant 0 : i32
    %c0_i32_1 = arith.constant 0 : i32
    return %c0_i32, %c0_i32_0 : i32, i32
  }
  func.func @transform_4(%arg0: i32) -> (i32, i32) {
    %c0_i32 = arith.constant 0 : i32
    %c0_i32_0 = arith.constant 0 : i32
    return %arg0, %c0_i32 : i32, i32
  }
}

</mosaic_0001>

<llo_original>
// kernel: tpu_custom_call.1
$region0: #{tpu_custom_call.1}
  #allocation0 [shape = 'u32[]', space=smem, size = 0x4, offset = 0x4, fixed_abs, tag = 'smem constant byte address 0x4 - core index']
  #allocation1 [shape = 'u32[72,128]{1,0:T(1,128)}', space=vmem, size = 0x9000, scoped, tag = 'internal scratch']
  %s0 = inlined_call_operand.vmem [shape: f32[96,16], index: 0, kind: input, shape index: {}]
  %s1 = inlined_call_operand.vmem [shape: f32[96,16], index: 1, kind: input, shape index: {}]
  %s2 = inlined_call_operand.vmem [shape: f32[16,16], index: 2, kind: input, shape index: {}]
  %s3 = inlined_call_operand.vmem [shape: f32[16,16], index: 3, kind: input, shape index: {}]
  %s4 = inlined_call_operand.hbm [shape: f32[1,1], index: 4, kind: output, shape index: {}]
  %s5 = sld [smem:[#allocation0]]
  $region26: #{tpu_custom_call.1} parent=0
    _
  %s7 = ssub.s32 1, %s5
  %s8 = scalar_select 0, %s7, %s5
  $region1: #{tpu_custom_call.1} parent=0
    #allocation2 [shape = 'u8[512]{0}', space=smem, size = 0x200, scoped, tag = 'output window, operand 0, single buffered']
    #allocation3 [shape = 's32[1]{0}', space=sflag, size = 0x4, scoped, tag = 'scoped memory for tpu_custom_call.1']
    %9 = vsyncpa [#allocation3], 0
    // Predicated region
    $region2: #{tpu_custom_call.1} parent=1 // pred_check
      _
    $region3: #{tpu_custom_call.1} parent=1 // pred_check_branch
      %11 = sbr.rel (0) target = $region5
    $region4: #{tpu_custom_call.1} parent=1 // pred_region
      _
    $region5: #{tpu_custom_call.1} parent=1 // pred_fallthru
      _
    // Predicated region
    $region6: #{tpu_custom_call.1} parent=1 // pred_check
      _
    $region7: #{tpu_custom_call.1} parent=1 // pred_check_branch
      %13 = sbr.rel (0) target = $region9
    $region8: #{tpu_custom_call.1} parent=1 // pred_region
      _
    $region9: #{tpu_custom_call.1} parent=1 // pred_fallthru
      _
    // Predicated region
    $region10: #{tpu_custom_call.1} parent=1 // pred_check
      _
    $region11: #{tpu_custom_call.1} parent=1 // pred_check_branch
      %15 = sbr.rel (0) target = $region13
    $region12: #{tpu_custom_call.1} parent=1 // pred_region
      _
    $region13: #{tpu_custom_call.1} parent=1 // pred_fallthru
      _
    // Predicated region
    $region14: #{tpu_custom_call.1} parent=1 // pred_check
      _
    $region15: #{tpu_custom_call.1} parent=1 // pred_check_branch
      %17 = sbr.rel (0) target = $region17
    $region16: #{tpu_custom_call.1} parent=1 // pred_region
      _
    $region17: #{tpu_custom_call.1} parent=1 // pred_fallthru
      _
    %v18 = vld [vmem:[%s0] sm:$0xff]
    %v19 = vld [vmem:[%s0 + $0x8] sm:$0xff]
    %v20 = vld [vmem:[%s0 + $0x10] sm:$0xff]
    %v21 = vld [vmem:[%s0 + $0x18] sm:$0xff]
    %v22 = vld [vmem:[%s0 + $0x20] sm:$0xff]
    %v23 = vld [vmem:[%s0 + $0x28] sm:$0xff]
    %v24 = vld [vmem:[%s0 + $0x30] sm:$0xff]
    %v25 = vld [vmem:[%s0 + $0x38] sm:$0xff]
    %v26 = vld [vmem:[%s0 + $0x40] sm:$0xff]
    %v27 = vld [vmem:[%s0 + $0x48] sm:$0xff]
    %v28 = vld [vmem:[%s0 + $0x50] sm:$0xff]
    %v29 = vld [vmem:[%s0 + $0x58] sm:$0xff]
    %v30 = vld [vmem:[%s1] sm:$0xff]
    %v31 = vld [vmem:[%s1 + $0x8] sm:$0xff]
    %v32 = vld [vmem:[%s1 + $0x10] sm:$0xff]
    %v33 = vld [vmem:[%s1 + $0x18] sm:$0xff]
    %v34 = vld [vmem:[%s1 + $0x20] sm:$0xff]
    %v35 = vld [vmem:[%s1 + $0x28] sm:$0xff]
    %v36 = vld [vmem:[%s1 + $0x30] sm:$0xff]
    %v37 = vld [vmem:[%s1 + $0x38] sm:$0xff]
    %v38 = vld [vmem:[%s1 + $0x40] sm:$0xff]
    %v39 = vld [vmem:[%s1 + $0x48] sm:$0xff]
    %v40 = vld [vmem:[%s1 + $0x50] sm:$0xff]
    %v41 = vld [vmem:[%s1 + $0x58] sm:$0xff]
    %v42 = vsub.f32 %v18, %v30
    %v43 = vsub.f32 %v19, %v31
    %v44 = vsub.f32 %v20, %v32
    %v45 = vsub.f32 %v21, %v33
    %v46 = vsub.f32 %v22, %v34
    %v47 = vsub.f32 %v23, %v35
    %v48 = vsub.f32 %v24, %v36
    %v49 = vsub.f32 %v25, %v37
    %v50 = vsub.f32 %v26, %v38
    %v51 = vsub.f32 %v27, %v39
    %v52 = vsub.f32 %v28, %v40
    %v53 = vsub.f32 %v29, %v41
    %v54 = vlaneseq
    %v55 = vshrl.u32 %v54, 7
    %v56 = vadd.s32 %v55, 8
    %v57 = vadd.s32 %v55, 16
    %v58 = vadd.s32 %v55, 24
    %v59 = vadd.s32 %v55, 32
    %v60 = vadd.s32 %v55, 40
    %v61 = vadd.s32 %v55, 48
    %v62 = vadd.s32 %v55, 56
    %v63 = vadd.s32 %v55, 64
    %v64 = vadd.s32 %v55, 72
    %v65 = vadd.s32 %v55, 80
    %v66 = vadd.s32 %v55, 88
    %v67 = vand.u32 %v55, 15
    %v68 = vand.u32 %v56, 15
    %v69 = vand.u32 %v57, 15
    %v70 = vand.u32 %v58, 15
    %v71 = vand.u32 %v59, 15
    %v72 = vand.u32 %v60, 15
    %v73 = vand.u32 %v61, 15
    %v74 = vand.u32 %v62, 15
    %v75 = vand.u32 %v63, 15
    %v76 = vand.u32 %v64, 15
    %v77 = vand.u32 %v65, 15
    %v78 = vand.u32 %v66, 15
    %vm79 = vcmp.ne.s32.totalorder %v67, 0
    %vm80 = vcmp.ne.s32.totalorder %v68, 0
    %vm81 = vcmp.ne.s32.totalorder %v69, 0
    %vm82 = vcmp.ne.s32.totalorder %v70, 0
    %vm83 = vcmp.ne.s32.totalorder %v71, 0
    %vm84 = vcmp.ne.s32.totalorder %v72, 0
    %vm85 = vcmp.ne.s32.totalorder %v73, 0
    %vm86 = vcmp.ne.s32.totalorder %v74, 0
    %vm87 = vcmp.ne.s32.totalorder %v75, 0
    %vm88 = vcmp.ne.s32.totalorder %v76, 0
    %vm89 = vcmp.ne.s32.totalorder %v77, 0
    %vm90 = vcmp.ne.s32.totalorder %v78, 0
    %v91 = vsel %vm79, 1, 0
    %v92 = vsel %vm80, 1, 0
    %v93 = vsel %vm81, 1, 0
    %v94 = vsel %vm82, 1, 0
    %v95 = vsel %vm83, 1, 0
    %v96 = vsel %vm84, 1, 0
    %v97 = vsel %vm85, 1, 0
    %v98 = vsel %vm86, 1, 0
    %v99 = vsel %vm87, 1, 0
    %v100 = vsel %vm88, 1, 0
    %v101 = vsel %vm89, 1, 0
    %v102 = vsel %vm90, 1, 0
    %v103 = vcvt.s32.f32 %v91
    %v104 = vcvt.s32.f32 %v92
    %v105 = vcvt.s32.f32 %v93
    %v106 = vcvt.s32.f32 %v94
    %v107 = vcvt.s32.f32 %v95
    %v108 = vcvt.s32.f32 %v96
    %v109 = vcvt.s32.f32 %v97
    %v110 = vcvt.s32.f32 %v98
    %v111 = vcvt.s32.f32 %v99
    %v112 = vcvt.s32.f32 %v100
    %v113 = vcvt.s32.f32 %v101
    %v114 = vcvt.s32.f32 %v102
    %vm115 = vcmp.ne.s32.totalorder %v67, 15
    %vm116 = vcmp.ne.s32.totalorder %v68, 15
    %vm117 = vcmp.ne.s32.totalorder %v69, 15
    %vm118 = vcmp.ne.s32.totalorder %v70, 15
    %vm119 = vcmp.ne.s32.totalorder %v71, 15
    %vm120 = vcmp.ne.s32.totalorder %v72, 15
    %vm121 = vcmp.ne.s32.totalorder %v73, 15
    %vm122 = vcmp.ne.s32.totalorder %v74, 15
    %vm123 = vcmp.ne.s32.totalorder %v75, 15
    %vm124 = vcmp.ne.s32.totalorder %v76, 15
    %vm125 = vcmp.ne.s32.totalorder %v77, 15
    %vm126 = vcmp.ne.s32.totalorder %v78, 15
    %v127 = vsel %vm115, 1, 0
    %v128 = vsel %vm116, 1, 0
    %v129 = vsel %vm117, 1, 0
    %v130 = vsel %vm118, 1, 0
    %v131 = vsel %vm119, 1, 0
    %v132 = vsel %vm120, 1, 0
    %v133 = vsel %vm121, 1, 0
    %v134 = vsel %vm122, 1, 0
    %v135 = vsel %vm123, 1, 0
    %v136 = vsel %vm124, 1, 0
    %v137 = vsel %vm125, 1, 0
    %v138 = vsel %vm126, 1, 0
    %v139 = vcvt.s32.f32 %v127
    %v140 = vcvt.s32.f32 %v128
    %v141 = vcvt.s32.f32 %v129
    %v142 = vcvt.s32.f32 %v130
    %v143 = vcvt.s32.f32 %v131
    %v144 = vcvt.s32.f32 %v132
    %v145 = vcvt.s32.f32 %v133
    %v146 = vcvt.s32.f32 %v134
    %v147 = vcvt.s32.f32 %v135
    %v148 = vcvt.s32.f32 %v136
    %v149 = vcvt.s32.f32 %v137
    %v150 = vcvt.s32.f32 %v138
    %v151 = vrot.slane %v42, 7
    %v152 = vrot.slane %v43, 7
    %v153 = vrot.slane %v44, 7
    %v154 = vrot.slane %v45, 7
    %v155 = vrot.slane %v46, 7
    %v156 = vrot.slane %v47, 7
    %v157 = vrot.slane %v48, 7
    %v158 = vrot.slane %v49, 7
    %v159 = vrot.slane %v50, 7
    %v160 = vrot.slane %v51, 7
    %v161 = vrot.slane %v52, 7
    %v162 = vrot.slane %v53, 7
    %vm163 = vcmp.lt.s32.totalorder %v55, 1
    %v164 = vsel %vm163, %v161, %v162
    %v165 = vsel %vm163, %v160, %v161
    %v166 = vsel %vm163, %v159, %v160
    %v167 = vsel %vm163, %v158, %v159
    %v168 = vsel %vm163, %v157, %v158
    %v169 = vsel %vm163, %v156, %v157
    %v170 = vsel %vm163, %v155, %v156
    %v171 = vsel %vm163, %v154, %v155
    %v172 = vsel %vm163, %v153, %v154
    %v173 = vsel %vm163, %v152, %v153
    %v174 = vsel %vm163, %v151, %v152
    %v175 = vsel %vm163, %v162, %v151
    %v176 = vmul.f32 %v175, %v103
    %v177 = vmul.f32 %v174, %v104
    %v178 = vmul.f32 %v173, %v105
    %v179 = vmul.f32 %v172, %v106
    %v180 = vmul.f32 %v171, %v107
    %v181 = vmul.f32 %v170, %v108
    %v182 = vmul.f32 %v169, %v109
    %v183 = vmul.f32 %v168, %v110
    %v184 = vmul.f32 %v167, %v111
    %v185 = vmul.f32 %v166, %v112
    %v186 = vmul.f32 %v165, %v113
    %v187 = vmul.f32 %v164, %v114
    %v188 = vrot.slane %v42, 1
    %v189 = vrot.slane %v43, 1
    %v190 = vrot.slane %v44, 1
    %v191 = vrot.slane %v45, 1
    %v192 = vrot.slane %v46, 1
    %v193 = vrot.slane %v47, 1
    %v194 = vrot.slane %v48, 1
    %v195 = vrot.slane %v49, 1
    %v196 = vrot.slane %v50, 1
    %v197 = vrot.slane %v51, 1
    %v198 = vrot.slane %v52, 1
    %v199 = vrot.slane %v53, 1
    %vm200 = vcmp.lt.s32.totalorder %v55, 7
    %v201 = vsel %vm200, %v198, %v199
    %v202 = vsel %vm200, %v197, %v198
    %v203 = vsel %vm200, %v196, %v197
    %v204 = vsel %vm200, %v195, %v196
    %v205 = vsel %vm200, %v194, %v195
    %v206 = vsel %vm200, %v193, %v194
    %v207 = vsel %vm200, %v192, %v193
    %v208 = vsel %vm200, %v191, %v192
    %v209 = vsel %vm200, %v190, %v191
    %v210 = vsel %vm200, %v189, %v190
    %v211 = vsel %vm200, %v188, %v189
    %v212 = vsel %vm200, %v199, %v188
    %v213 = vmul.f32 %v211, %v139
    %v214 = vmul.f32 %v210, %v140
    %v215 = vmul.f32 %v209, %v141
    %v216 = vmul.f32 %v208, %v142
    %v217 = vmul.f32 %v207, %v143
    %v218 = vmul.f32 %v206, %v144
    %v219 = vmul.f32 %v205, %v145
    %v220 = vmul.f32 %v204, %v146
    %v221 = vmul.f32 %v203, %v147
    %v222 = vmul.f32 %v202, %v148
    %v223 = vmul.f32 %v201, %v149
    %v224 = vmul.f32 %v212, %v150
    %v225 = vmul.f32 %v42, 2.0
    %v226 = vmul.f32 %v43, 2.0
    %v227 = vmul.f32 %v44, 2.0
    %v228 = vmul.f32 %v45, 2.0
    %v229 = vmul.f32 %v46, 2.0
    %v230 = vmul.f32 %v47, 2.0
    %v231 = vmul.f32 %v48, 2.0
    %v232 = vmul.f32 %v49, 2.0
    %v233 = vmul.f32 %v50, 2.0
    %v234 = vmul.f32 %v51, 2.0
    %v235 = vmul.f32 %v52, 2.0
    %v236 = vmul.f32 %v53, 2.0
    %v237 = vadd.f32 %v176, %v225
    %v238 = vadd.f32 %v177, %v226
    %v239 = vadd.f32 %v178, %v227
    %v240 = vadd.f32 %v179, %v228
    %v241 = vadd.f32 %v180, %v229
    %v242 = vadd.f32 %v181, %v230
    %v243 = vadd.f32 %v182, %v231
    %v244 = vadd.f32 %v183, %v232
    %v245 = vadd.f32 %v184, %v233
    %v246 = vadd.f32 %v185, %v234
    %v247 = vadd.f32 %v186, %v235
    %v248 = vadd.f32 %v187, %v236
    %v249 = vadd.f32 %v237, %v213
    %v250 = vadd.f32 %v238, %v214
    %v251 = vadd.f32 %v239, %v215
    %v252 = vadd.f32 %v240, %v216
    %v253 = vadd.f32 %v241, %v217
    %v254 = vadd.f32 %v242, %v218
    %v255 = vadd.f32 %v243, %v219
    %v256 = vadd.f32 %v244, %v220
    %v257 = vadd.f32 %v245, %v221
    %v258 = vadd.f32 %v246, %v222
    %v259 = vadd.f32 %v247, %v223
    %v260 = vadd.f32 %v248, %v224
    %v261 = vsub.f32 %v176, %v213
    %v262 = vsub.f32 %v177, %v214
    %v263 = vsub.f32 %v178, %v215
    %v264 = vsub.f32 %v179, %v216
    %v265 = vsub.f32 %v180, %v217
    %v266 = vsub.f32 %v181, %v218
    %v267 = vsub.f32 %v182, %v219
    %v268 = vsub.f32 %v183, %v220
    %v269 = vsub.f32 %v184, %v221
    %v270 = vsub.f32 %v185, %v222
    %v271 = vsub.f32 %v186, %v223
    %v272 = vsub.f32 %v187, %v224
    %v273 = vld [vmem:[%s2] sm:$0xff]
    %v274 = vld [vmem:[%s2 + $0x8] sm:$0xff]
    %vm275 = vcmask 130048
    %v277 = vsel %vm275, %v249, 0
    %v280 = vsel %vm275, %v250, 0
    %v283 = vsel %vm275, %v251, 0
    %v286 = vsel %vm275, %v252, 0
    %v289 = vsel %vm275, %v253, 0
    %v292 = vsel %vm275, %v254, 0
    %v295 = vsel %vm275, %v255, 0
    %v298 = vsel %vm275, %v256, 0
    %v301 = vsel %vm275, %v257, 0
    %v304 = vsel %vm275, %v258, 0
    %v307 = vsel %vm275, %v259, 0
    %v310 = vsel %vm275, %v260, 0
    %312 = vmatpush.msra.mxu0 0.0
    %313 = vmatpush.msra.mxu0 0.0
    %314 = vmatpush.msra.mxu0 0.0
    %315 = vmatpush.msra.mxu0 0.0
    %316 = vmatpush.msra.mxu0 0.0
    %317 = vmatpush.msra.mxu0 0.0
    %318 = vmatpush.msra.mxu0 0.0
    %319 = vmatpush.msra.mxu0 0.0
    %320 = vmatpush.msra.mxu0 0.0
    %321 = vmatpush.msra.mxu0 0.0
    %322 = vmatpush.msra.mxu0 0.0
    %323 = vmatpush.msra.mxu0 0.0
    %324 = vmatpush.msra.mxu0 0.0
    %325 = vmatpush.msra.mxu0 0.0
    %v326 = vand.u32 %v274, 4294901760
    %327 = vmatpush.msra.mxu0 %v326
    %v328 = vand.u32 %v273, 4294901760
    %329 = vmatpush.msra.mxu0 %v328
    %v330 = vand.u32 %v277, 4294901760
    %v331 = vsub.f32 %v277, %v330
    %v332 = vand.u32 %v331, 4294901760
    %v333 = vsub.f32 %v331, %v332
    %v334 = vand.u32 %v333, 4294901760
    %335 = vmatmul.f32.gmra.mxu0 %v334
    %v336 = vpop.f32.mrf.mxu0
    %v337 = vadd.f32 0.0, %v336
    %v338 = vand.u32 %v280, 4294901760
    %v339 = vsub.f32 %v280, %v338
    %v340 = vand.u32 %v339, 4294901760
    %v341 = vsub.f32 %v339, %v340
    %v342 = vand.u32 %v341, 4294901760
    %343 = vmatmul.f32.gmra.mxu0 %v342
    %v344 = vpop.f32.mrf.mxu0
    %v345 = vadd.f32 0.0, %v344
    %v346 = vand.u32 %v283, 4294901760
    %v347 = vsub.f32 %v283, %v346
    %v348 = vand.u32 %v347, 4294901760
    %v349 = vsub.f32 %v347, %v348
    %v350 = vand.u32 %v349, 4294901760
    %351 = vmatmul.f32.gmra.mxu0 %v350
    %v352 = vpop.f32.mrf.mxu0
    %v353 = vadd.f32 0.0, %v352
    %v354 = vand.u32 %v286, 4294901760
    %v355 = vsub.f32 %v286, %v354
    %v356 = vand.u32 %v355, 4294901760
    %v357 = vsub.f32 %v355, %v356
    %v358 = vand.u32 %v357, 4294901760
    %359 = vmatmul.f32.gmra.mxu0 %v358
    %v360 = vpop.f32.mrf.mxu0
    %v361 = vadd.f32 0.0, %v360
    %v362 = vand.u32 %v289, 4294901760
    %v363 = vsub.f32 %v289, %v362
    %v364 = vand.u32 %v363, 4294901760
    %v365 = vsub.f32 %v363, %v364
    %v366 = vand.u32 %v365, 4294901760
    %367 = vmatmul.f32.gmra.mxu0 %v366
    %v368 = vpop.f32.mrf.mxu0
    %v369 = vadd.f32 0.0, %v368
    %v370 = vand.u32 %v292, 4294901760
    %v371 = vsub.f32 %v292, %v370
    %v372 = vand.u32 %v371, 4294901760
    %v373 = vsub.f32 %v371, %v372
    %v374 = vand.u32 %v373, 4294901760
    %375 = vmatmul.f32.gmra.mxu0 %v374
    %v376 = vpop.f32.mrf.mxu0
    %v377 = vadd.f32 0.0, %v376
    %v378 = vand.u32 %v295, 4294901760
    %v379 = vsub.f32 %v295, %v378
    %v380 = vand.u32 %v379, 4294901760
    %v381 = vsub.f32 %v379, %v380
    %v382 = vand.u32 %v381, 4294901760
    %383 = vmatmul.f32.gmra.mxu0 %v382
    %v384 = vpop.f32.mrf.mxu0
    %v385 = vadd.f32 0.0, %v384
    %v386 = vand.u32 %v298, 4294901760
    %v387 = vsub.f32 %v298, %v386
    %v388 = vand.u32 %v387, 4294901760
    %v389 = vsub.f32 %v387, %v388
    %v390 = vand.u32 %v389, 4294901760
    %391 = vmatmul.f32.gmra.mxu0 %v390
    %v392 = vpop.f32.mrf.mxu0
    %v393 = vadd.f32 0.0, %v392
    %v394 = vand.u32 %v301, 4294901760
    %v395 = vsub.f32 %v301, %v394
    %v396 = vand.u32 %v395, 4294901760
    %v397 = vsub.f32 %v395, %v396
    %v398 = vand.u32 %v397, 4294901760
    %399 = vmatmul.f32.gmra.mxu0 %v398
    %v400 = vpop.f32.mrf.mxu0
    %v401 = vadd.f32 0.0, %v400
    %v402 = vand.u32 %v304, 4294901760
    %v403 = vsub.f32 %v304, %v402
    %v404 = vand.u32 %v403, 4294901760
    %v405 = vsub.f32 %v403, %v404
    %v406 = vand.u32 %v405, 4294901760
    %407 = vmatmul.f32.gmra.mxu0 %v406
    %v408 = vpop.f32.mrf.mxu0
    %v409 = vadd.f32 0.0, %v408
    %v410 = vand.u32 %v307, 4294901760
    %v411 = vsub.f32 %v307, %v410
    %v412 = vand.u32 %v411, 4294901760
    %v413 = vsub.f32 %v411, %v412
    %v414 = vand.u32 %v413, 4294901760
    %415 = vmatmul.f32.gmra.mxu0 %v414
    %v416 = vpop.f32.mrf.mxu0
    %v417 = vadd.f32 0.0, %v416
    %v418 = vand.u32 %v310, 4294901760
    %v419 = vsub.f32 %v310, %v418
    %v420 = vand.u32 %v419, 4294901760
    %v421 = vsub.f32 %v419, %v420
    %v422 = vand.u32 %v421, 4294901760
    %423 = vmatmul.f32.gmra.mxu0 %v422
    %v424 = vpop.f32.mrf.mxu0
    %v425 = vadd.f32 0.0, %v424
    %426 = vdwg.mxu0
    %427 = vmatpush.msra.mxu0 0.0
    %428 = vmatpush.msra.mxu0 0.0
    %429 = vmatpush.msra.mxu0 0.0
    %430 = vmatpush.msra.mxu0 0.0
    %431 = vmatpush.msra.mxu0 0.0
    %432 = vmatpush.msra.mxu0 0.0
    %433 = vmatpush.msra.mxu0 0.0
    %434 = vmatpush.msra.mxu0 0.0
    %435 = vmatpush.msra.mxu0 0.0
    %436 = vmatpush.msra.mxu0 0.0
    %437 = vmatpush.msra.mxu0 0.0
    %438 = vmatpush.msra.mxu0 0.0
    %439 = vmatpush.msra.mxu0 0.0
    %440 = vmatpush.msra.mxu0 0.0
    %v441 = vand.u32 %v274, 4294901760
    %v442 = vsub.f32 %v274, %v441
    %v443 = vand.u32 %v442, 4294901760
    %v444 = vsub.f32 %v442, %v443
    %v445 = vand.u32 %v444, 4294901760
    %446 = vmatpush.msra.mxu0 %v445
    %v447 = vand.u32 %v273, 4294901760
    %v448 = vsub.f32 %v273, %v447
    %v449 = vand.u32 %v448, 4294901760
    %v450 = vsub.f32 %v448, %v449
    %v451 = vand.u32 %v450, 4294901760
    %452 = vmatpush.msra.mxu0 %v451
    %v453 = vand.u32 %v277, 4294901760
    %454 = vmatmul.f32.gmra.mxu0 %v453
    %v455 = vpop.f32.mrf.mxu0
    %v456 = vadd.f32 %v337, %v455
    %v457 = vand.u32 %v280, 4294901760
    %458 = vmatmul.f32.gmra.mxu0 %v457
    %v459 = vpop.f32.mrf.mxu0
    %v460 = vadd.f32 %v345, %v459
    %v461 = vand.u32 %v283, 4294901760
    %462 = vmatmul.f32.gmra.mxu0 %v461
    %v463 = vpop.f32.mrf.mxu0
    %v464 = vadd.f32 %v353, %v463
    %v465 = vand.u32 %v286, 4294901760
    %466 = vmatmul.f32.gmra.mxu0 %v465
    %v467 = vpop.f32.mrf.mxu0
    %v468 = vadd.f32 %v361, %v467
    %v469 = vand.u32 %v289, 4294901760
    %470 = vmatmul.f32.gmra.mxu0 %v469
    %v471 = vpop.f32.mrf.mxu0
    %v472 = vadd.f32 %v369, %v471
    %v473 = vand.u32 %v292, 4294901760
    %474 = vmatmul.f32.gmra.mxu0 %v473
    %v475 = vpop.f32.mrf.mxu0
    %v476 = vadd.f32 %v377, %v475
    %v477 = vand.u32 %v295, 4294901760
    %478 = vmatmul.f32.gmra.mxu0 %v477
    %v479 = vpop.f32.mrf.mxu0
    %v480 = vadd.f32 %v385, %v479
    %v481 = vand.u32 %v298, 4294901760
    %482 = vmatmul.f32.gmra.mxu0 %v481
    %v483 = vpop.f32.mrf.mxu0
    %v484 = vadd.f32 %v393, %v483
    %v485 = vand.u32 %v301, 4294901760
    %486 = vmatmul.f32.gmra.mxu0 %v485
    %v487 = vpop.f32.mrf.mxu0
    %v488 = vadd.f32 %v401, %v487
    %v489 = vand.u32 %v304, 4294901760
    %490 = vmatmul.f32.gmra.mxu0 %v489
    %v491 = vpop.f32.mrf.mxu0
    %v492 = vadd.f32 %v409, %v491
    %v493 = vand.u32 %v307, 4294901760
    %494 = vmatmul.f32.gmra.mxu0 %v493
    %v495 = vpop.f32.mrf.mxu0
    %v496 = vadd.f32 %v417, %v495
    %v497 = vand.u32 %v310, 4294901760
    %498 = vmatmul.f32.gmra.mxu0 %v497
    %v499 = vpop.f32.mrf.mxu0
    %v500 = vadd.f32 %v425, %v499
    %501 = vdwg.mxu0
    %502 = vmatpush.msra.mxu0 0.0
    %503 = vmatpush.msra.mxu0 0.0
    %504 = vmatpush.msra.mxu0 0.0
    %505 = vmatpush.msra.mxu0 0.0
    %506 = vmatpush.msra.mxu0 0.0
    %507 = vmatpush.msra.mxu0 0.0
    %508 = vmatpush.msra.mxu0 0.0
    %509 = vmatpush.msra.mxu0 0.0
    %510 = vmatpush.msra.mxu0 0.0
    %511 = vmatpush.msra.mxu0 0.0
    %512 = vmatpush.msra.mxu0 0.0
    %513 = vmatpush.msra.mxu0 0.0
    %514 = vmatpush.msra.mxu0 0.0
    %515 = vmatpush.msra.mxu0 0.0
    %v516 = vand.u32 %v274, 4294901760
    %v517 = vsub.f32 %v274, %v516
    %518 = vmatpush.msra.mxu0 %v517
    %v519 = vand.u32 %v273, 4294901760
    %v520 = vsub.f32 %v273, %v519
    %521 = vmatpush.msra.mxu0 %v520
    %v522 = vand.u32 %v277, 4294901760
    %v523 = vsub.f32 %v277, %v522
    %524 = vmatmul.f32.gmra.mxu0 %v523
    %v525 = vpop.f32.mrf.mxu0
    %v526 = vadd.f32 %v456, %v525
    %v527 = vand.u32 %v280, 4294901760
    %v528 = vsub.f32 %v280, %v527
    %529 = vmatmul.f32.gmra.mxu0 %v528
    %v530 = vpop.f32.mrf.mxu0
    %v531 = vadd.f32 %v460, %v530
    %v532 = vand.u32 %v283, 4294901760
    %v533 = vsub.f32 %v283, %v532
    %534 = vmatmul.f32.gmra.mxu0 %v533
    %v535 = vpop.f32.mrf.mxu0
    %v536 = vadd.f32 %v464, %v535
    %v537 = vand.u32 %v286, 4294901760
    %v538 = vsub.f32 %v286, %v537
    %539 = vmatmul.f32.gmra.mxu0 %v538
    %v540 = vpop.f32.mrf.mxu0
    %v541 = vadd.f32 %v468, %v540
    %v542 = vand.u32 %v289, 4294901760
    %v543 = vsub.f32 %v289, %v542
    %544 = vmatmul.f32.gmra.mxu0 %v543
    %v545 = vpop.f32.mrf.mxu0
    %v546 = vadd.f32 %v472, %v545
    %v547 = vand.u32 %v292, 4294901760
    %v548 = vsub.f32 %v292, %v547
    %549 = vmatmul.f32.gmra.mxu0 %v548
    %v550 = vpop.f32.mrf.mxu0
    %v551 = vadd.f32 %v476, %v550
    %v552 = vand.u32 %v295, 4294901760
    %v553 = vsub.f32 %v295, %v552
    %554 = vmatmul.f32.gmra.mxu0 %v553
    %v555 = vpop.f32.mrf.mxu0
    %v556 = vadd.f32 %v480, %v555
    %v557 = vand.u32 %v298, 4294901760
    %v558 = vsub.f32 %v298, %v557
    %559 = vmatmul.f32.gmra.mxu0 %v558
    %v560 = vpop.f32.mrf.mxu0
    %v561 = vadd.f32 %v484, %v560
    %v562 = vand.u32 %v301, 4294901760
    %v563 = vsub.f32 %v301, %v562
    %564 = vmatmul.f32.gmra.mxu0 %v563
    %v565 = vpop.f32.mrf.mxu0
    %v566 = vadd.f32 %v488, %v565
    %v567 = vand.u32 %v304, 4294901760
    %v568 = vsub.f32 %v304, %v567
    %569 = vmatmul.f32.gmra.mxu0 %v568
    %v570 = vpop.f32.mrf.mxu0
    %v571 = vadd.f32 %v492, %v570
    %v572 = vand.u32 %v307, 4294901760
    %v573 = vsub.f32 %v307, %v572
    %574 = vmatmul.f32.gmra.mxu0 %v573
    %v575 = vpop.f32.mrf.mxu0
    %v576 = vadd.f32 %v496, %v575
    %v577 = vand.u32 %v310, 4294901760
    %v578 = vsub.f32 %v310, %v577
    %579 = vmatmul.f32.gmra.mxu0 %v578
    %v580 = vpop.f32.mrf.mxu0
    %v581 = vadd.f32 %v500, %v580
    %582 = vdwg.mxu0
    %583 = vmatpush.msra.mxu0 0.0
    %584 = vmatpush.msra.mxu0 0.0
    %585 = vmatpush.msra.mxu0 0.0
    %586 = vmatpush.msra.mxu0 0.0
    %587 = vmatpush.msra.mxu0 0.0
    %588 = vmatpush.msra.mxu0 0.0
    %589 = vmatpush.msra.mxu0 0.0
    %590 = vmatpush.msra.mxu0 0.0
    %591 = vmatpush.msra.mxu0 0.0
    %592 = vmatpush.msra.mxu0 0.0
    %593 = vmatpush.msra.mxu0 0.0
    %594 = vmatpush.msra.mxu0 0.0
    %595 = vmatpush.msra.mxu0 0.0
    %596 = vmatpush.msra.mxu0 0.0
    %v597 = vand.u32 %v274, 4294901760
    %598 = vmatpush.msra.mxu0 %v597
    %v599 = vand.u32 %v273, 4294901760
    %600 = vmatpush.msra.mxu0 %v599
    %v601 = vand.u32 %v277, 4294901760
    %v602 = vsub.f32 %v277, %v601
    %v603 = vand.u32 %v602, 4294901760
    %604 = vmatmul.f32.gmra.mxu0 %v603
    %v605 = vpop.f32.mrf.mxu0
    %v606 = vadd.f32 %v526, %v605
    %v607 = vand.u32 %v280, 4294901760
    %v608 = vsub.f32 %v280, %v607
    %v609 = vand.u32 %v608, 4294901760
    %610 = vmatmul.f32.gmra.mxu0 %v609
    %v611 = vpop.f32.mrf.mxu0
    %v612 = vadd.f32 %v531, %v611
    %v613 = vand.u32 %v283, 4294901760
    %v614 = vsub.f32 %v283, %v613
    %v615 = vand.u32 %v614, 4294901760
    %616 = vmatmul.f32.gmra.mxu0 %v615
    %v617 = vpop.f32.mrf.mxu0
    %v618 = vadd.f32 %v536, %v617
    %v619 = vand.u32 %v286, 4294901760
    %v620 = vsub.f32 %v286, %v619
    %v621 = vand.u32 %v620, 4294901760
    %622 = vmatmul.f32.gmra.mxu0 %v621
    %v623 = vpop.f32.mrf.mxu0
    %v624 = vadd.f32 %v541, %v623
    %v625 = vand.u32 %v289, 4294901760
    %v626 = vsub.f32 %v289, %v625
    %v627 = vand.u32 %v626, 4294901760
    %628 = vmatmul.f32.gmra.mxu0 %v627
    %v629 = vpop.f32.mrf.mxu0
    %v630 = vadd.f32 %v546, %v629
    %v631 = vand.u32 %v292, 4294901760
    %v632 = vsub.f32 %v292, %v631
    %v633 = vand.u32 %v632, 4294901760
    %634 = vmatmul.f32.gmra.mxu0 %v633
    %v635 = vpop.f32.mrf.mxu0
    %v636 = vadd.f32 %v551, %v635
    %v637 = vand.u32 %v295, 4294901760
    %v638 = vsub.f32 %v295, %v637
    %v639 = vand.u32 %v638, 4294901760
    %640 = vmatmul.f32.gmra.mxu0 %v639
    %v641 = vpop.f32.mrf.mxu0
    %v642 = vadd.f32 %v556, %v641
    %v643 = vand.u32 %v298, 4294901760
    %v644 = vsub.f32 %v298, %v643
    %v645 = vand.u32 %v644, 4294901760
    %646 = vmatmul.f32.gmra.mxu0 %v645
    %v647 = vpop.f32.mrf.mxu0
    %v648 = vadd.f32 %v561, %v647
    %v649 = vand.u32 %v301, 4294901760
    %v650 = vsub.f32 %v301, %v649
    %v651 = vand.u32 %v650, 4294901760
    %652 = vmatmul.f32.gmra.mxu0 %v651
    %v653 = vpop.f32.mrf.mxu0
    %v654 = vadd.f32 %v566, %v653
    %v655 = vand.u32 %v304, 4294901760
    %v656 = vsub.f32 %v304, %v655
    %v657 = vand.u32 %v656, 4294901760
    %658 = vmatmul.f32.gmra.mxu0 %v657
    %v659 = vpop.f32.mrf.mxu0
    %v660 = vadd.f32 %v571, %v659
    %v661 = vand.u32 %v307, 4294901760
    %v662 = vsub.f32 %v307, %v661
    %v663 = vand.u32 %v662, 4294901760
    %664 = vmatmul.f32.gmra.mxu0 %v663
    %v665 = vpop.f32.mrf.mxu0
    %v666 = vadd.f32 %v576, %v665
    %v667 = vand.u32 %v310, 4294901760
    %v668 = vsub.f32 %v310, %v667
    %v669 = vand.u32 %v668, 4294901760
    %670 = vmatmul.f32.gmra.mxu0 %v669
    %v671 = vpop.f32.mrf.mxu0
    %v672 = vadd.f32 %v581, %v671
    %673 = vdwg.mxu0
    %674 = vmatpush.msra.mxu0 0.0
    %675 = vmatpush.msra.mxu0 0.0
    %676 = vmatpush.msra.mxu0 0.0
    %677 = vmatpush.msra.mxu0 0.0
    %678 = vmatpush.msra.mxu0 0.0
    %679 = vmatpush.msra.mxu0 0.0
    %680 = vmatpush.msra.mxu0 0.0
    %681 = vmatpush.msra.mxu0 0.0
    %682 = vmatpush.msra.mxu0 0.0
    %683 = vmatpush.msra.mxu0 0.0
    %684 = vmatpush.msra.mxu0 0.0
    %685 = vmatpush.msra.mxu0 0.0
    %686 = vmatpush.msra.mxu0 0.0
    %687 = vmatpush.msra.mxu0 0.0
    %v688 = vand.u32 %v274, 4294901760
    %v689 = vsub.f32 %v274, %v688
    %v690 = vand.u32 %v689, 4294901760
    %691 = vmatpush.msra.mxu0 %v690
    %v692 = vand.u32 %v273, 4294901760
    %v693 = vsub.f32 %v273, %v692
    %v694 = vand.u32 %v693, 4294901760
    %695 = vmatpush.msra.mxu0 %v694
    %v696 = vand.u32 %v277, 4294901760
    %697 = vmatmul.f32.gmra.mxu0 %v696
    %v698 = vpop.f32.mrf.mxu0
    %v699 = vadd.f32 %v606, %v698
    %v700 = vand.u32 %v280, 4294901760
    %701 = vmatmul.f32.gmra.mxu0 %v700
    %v702 = vpop.f32.mrf.mxu0
    %v703 = vadd.f32 %v612, %v702
    %v704 = vand.u32 %v283, 4294901760
    %705 = vmatmul.f32.gmra.mxu0 %v704
    %v706 = vpop.f32.mrf.mxu0
    %v707 = vadd.f32 %v618, %v706
    %v708 = vand.u32 %v286, 4294901760
    %709 = vmatmul.f32.gmra.mxu0 %v708
    %v710 = vpop.f32.mrf.mxu0
    %v711 = vadd.f32 %v624, %v710
    %v712 = vand.u32 %v289, 4294901760
    %713 = vmatmul.f32.gmra.mxu0 %v712
    %v714 = vpop.f32.mrf.mxu0
    %v715 = vadd.f32 %v630, %v714
    %v716 = vand.u32 %v292, 4294901760
    %717 = vmatmul.f32.gmra.mxu0 %v716
    %v718 = vpop.f32.mrf.mxu0
    %v719 = vadd.f32 %v636, %v718
    %v720 = vand.u32 %v295, 4294901760
    %721 = vmatmul.f32.gmra.mxu0 %v720
    %v722 = vpop.f32.mrf.mxu0
    %v723 = vadd.f32 %v642, %v722
    %v724 = vand.u32 %v298, 4294901760
    %725 = vmatmul.f32.gmra.mxu0 %v724
    %v726 = vpop.f32.mrf.mxu0
    %v727 = vadd.f32 %v648, %v726
    %v728 = vand.u32 %v301, 4294901760
    %729 = vmatmul.f32.gmra.mxu0 %v728
    %v730 = vpop.f32.mrf.mxu0
    %v731 = vadd.f32 %v654, %v730
    %v732 = vand.u32 %v304, 4294901760
    %733 = vmatmul.f32.gmra.mxu0 %v732
    %v734 = vpop.f32.mrf.mxu0
    %v735 = vadd.f32 %v660, %v734
    %v736 = vand.u32 %v307, 4294901760
    %737 = vmatmul.f32.gmra.mxu0 %v736
    %v738 = vpop.f32.mrf.mxu0
    %v739 = vadd.f32 %v666, %v738
    %v740 = vand.u32 %v310, 4294901760
    %741 = vmatmul.f32.gmra.mxu0 %v740
    %v742 = vpop.f32.mrf.mxu0
    %v743 = vadd.f32 %v672, %v742
    %744 = vdwg.mxu0
    %745 = vmatpush.msra.mxu0 0.0
    %746 = vmatpush.msra.mxu0 0.0
    %747 = vmatpush.msra.mxu0 0.0
    %748 = vmatpush.msra.mxu0 0.0
    %749 = vmatpush.msra.mxu0 0.0
    %750 = vmatpush.msra.mxu0 0.0
    %751 = vmatpush.msra.mxu0 0.0
    %752 = vmatpush.msra.mxu0 0.0
    %753 = vmatpush.msra.mxu0 0.0
    %754 = vmatpush.msra.mxu0 0.0
    %755 = vmatpush.msra.mxu0 0.0
    %756 = vmatpush.msra.mxu0 0.0
    %757 = vmatpush.msra.mxu0 0.0
    %758 = vmatpush.msra.mxu0 0.0
    %v759 = vand.u32 %v274, 4294901760
    %760 = vmatpush.msra.mxu0 %v759
    %v761 = vand.u32 %v273, 4294901760
    %762 = vmatpush.msra.mxu0 %v761
    %v763 = vand.u32 %v277, 4294901760
    %764 = vmatmul.f32.gmra.mxu0 %v763
    %v765 = vpop.f32.mrf.mxu0
    %v766 = vadd.f32 %v699, %v765
    %v767 = vand.u32 %v280, 4294901760
    %768 = vmatmul.f32.gmra.mxu0 %v767
    %v769 = vpop.f32.mrf.mxu0
    %v770 = vadd.f32 %v703, %v769
    %v771 = vand.u32 %v283, 4294901760
    %772 = vmatmul.f32.gmra.mxu0 %v771
    %v773 = vpop.f32.mrf.mxu0
    %v774 = vadd.f32 %v707, %v773
    %v775 = vand.u32 %v286, 4294901760
    %776 = vmatmul.f32.gmra.mxu0 %v775
    %v777 = vpop.f32.mrf.mxu0
    %v778 = vadd.f32 %v711, %v777
    %v779 = vand.u32 %v289, 4294901760
    %780 = vmatmul.f32.gmra.mxu0 %v779
    %v781 = vpop.f32.mrf.mxu0
    %v782 = vadd.f32 %v715, %v781
    %v783 = vand.u32 %v292, 4294901760
    %784 = vmatmul.f32.gmra.mxu0 %v783
    %v785 = vpop.f32.mrf.mxu0
    %v786 = vadd.f32 %v719, %v785
    %v787 = vand.u32 %v295, 4294901760
    %788 = vmatmul.f32.gmra.mxu0 %v787
    %v789 = vpop.f32.mrf.mxu0
    %v790 = vadd.f32 %v723, %v789
    %v791 = vand.u32 %v298, 4294901760
    %792 = vmatmul.f32.gmra.mxu0 %v791
    %v793 = vpop.f32.mrf.mxu0
    %v794 = vadd.f32 %v727, %v793
    %v795 = vand.u32 %v301, 4294901760
    %796 = vmatmul.f32.gmra.mxu0 %v795
    %v797 = vpop.f32.mrf.mxu0
    %v798 = vadd.f32 %v731, %v797
    %v799 = vand.u32 %v304, 4294901760
    %800 = vmatmul.f32.gmra.mxu0 %v799
    %v801 = vpop.f32.mrf.mxu0
    %v802 = vadd.f32 %v735, %v801
    %v803 = vand.u32 %v307, 4294901760
    %804 = vmatmul.f32.gmra.mxu0 %v803
    %v805 = vpop.f32.mrf.mxu0
    %v806 = vadd.f32 %v739, %v805
    %v807 = vand.u32 %v310, 4294901760
    %808 = vmatmul.f32.gmra.mxu0 %v807
    %v809 = vpop.f32.mrf.mxu0
    %v810 = vadd.f32 %v743, %v809
    %811 = vdwg.mxu0
    %v812 = vld [vmem:[%s3] sm:$0xff]
    %v813 = vld [vmem:[%s3 + $0x8] sm:$0xff]
    %v815 = vsel %vm275, %v261, 0
    %v818 = vsel %vm275, %v262, 0
    %v821 = vsel %vm275, %v263, 0
    %v824 = vsel %vm275, %v264, 0
    %v827 = vsel %vm275, %v265, 0
    %v830 = vsel %vm275, %v266, 0
    %v833 = vsel %vm275, %v267, 0
    %v836 = vsel %vm275, %v268, 0
    %v839 = vsel %vm275, %v269, 0
    %v842 = vsel %vm275, %v270, 0
    %v845 = vsel %vm275, %v271, 0
    %v848 = vsel %vm275, %v272, 0
    %850 = vmatpush.msra.mxu0 0.0
    %851 = vmatpush.msra.mxu0 0.0
    %852 = vmatpush.msra.mxu0 0.0
    %853 = vmatpush.msra.mxu0 0.0
    %854 = vmatpush.msra.mxu0 0.0
    %855 = vmatpush.msra.mxu0 0.0
    %856 = vmatpush.msra.mxu0 0.0
    %857 = vmatpush.msra.mxu0 0.0
    %858 = vmatpush.msra.mxu0 0.0
    %859 = vmatpush.msra.mxu0 0.0
    %860 = vmatpush.msra.mxu0 0.0
    %861 = vmatpush.msra.mxu0 0.0
    %862 = vmatpush.msra.mxu0 0.0
    %863 = vmatpush.msra.mxu0 0.0
    %v864 = vand.u32 %v813, 4294901760
    %865 = vmatpush.msra.mxu0 %v864
    %v866 = vand.u32 %v812, 4294901760
    %867 = vmatpush.msra.mxu0 %v866
    %v868 = vand.u32 %v815, 4294901760
    %v869 = vsub.f32 %v815, %v868
    %v870 = vand.u32 %v869, 4294901760
    %v871 = vsub.f32 %v869, %v870
    %v872 = vand.u32 %v871, 4294901760
    %873 = vmatmul.f32.gmra.mxu0 %v872
    %v874 = vpop.f32.mrf.mxu0
    %v875 = vadd.f32 0.0, %v874
    %v876 = vand.u32 %v818, 4294901760
    %v877 = vsub.f32 %v818, %v876
    %v878 = vand.u32 %v877, 4294901760
    %v879 = vsub.f32 %v877, %v878
    %v880 = vand.u32 %v879, 4294901760
    %881 = vmatmul.f32.gmra.mxu0 %v880
    %v882 = vpop.f32.mrf.mxu0
    %v883 = vadd.f32 0.0, %v882
    %v884 = vand.u32 %v821, 4294901760
    %v885 = vsub.f32 %v821, %v884
    %v886 = vand.u32 %v885, 4294901760
    %v887 = vsub.f32 %v885, %v886
    %v888 = vand.u32 %v887, 4294901760
    %889 = vmatmul.f32.gmra.mxu0 %v888
    %v890 = vpop.f32.mrf.mxu0
    %v891 = vadd.f32 0.0, %v890
    %v892 = vand.u32 %v824, 4294901760
    %v893 = vsub.f32 %v824, %v892
    %v894 = vand.u32 %v893, 4294901760
    %v895 = vsub.f32 %v893, %v894
    %v896 = vand.u32 %v895, 4294901760
    %897 = vmatmul.f32.gmra.mxu0 %v896
    %v898 = vpop.f32.mrf.mxu0
    %v899 = vadd.f32 0.0, %v898
    %v900 = vand.u32 %v827, 4294901760
    %v901 = vsub.f32 %v827, %v900
    %v902 = vand.u32 %v901, 4294901760
    %v903 = vsub.f32 %v901, %v902
    %v904 = vand.u32 %v903, 4294901760
    %905 = vmatmul.f32.gmra.mxu0 %v904
    %v906 = vpop.f32.mrf.mxu0
    %v907 = vadd.f32 0.0, %v906
    %v908 = vand.u32 %v830, 4294901760
    %v909 = vsub.f32 %v830, %v908
    %v910 = vand.u32 %v909, 4294901760
    %v911 = vsub.f32 %v909, %v910
    %v912 = vand.u32 %v911, 4294901760
    %913 = vmatmul.f32.gmra.mxu0 %v912
    %v914 = vpop.f32.mrf.mxu0
    %v915 = vadd.f32 0.0, %v914
    %v916 = vand.u32 %v833, 4294901760
    %v917 = vsub.f32 %v833, %v916
    %v918 = vand.u32 %v917, 4294901760
    %v919 = vsub.f32 %v917, %v918
    %v920 = vand.u32 %v919, 4294901760
    %921 = vmatmul.f32.gmra.mxu0 %v920
    %v922 = vpop.f32.mrf.mxu0
    %v923 = vadd.f32 0.0, %v922
    %v924 = vand.u32 %v836, 4294901760
    %v925 = vsub.f32 %v836, %v924
    %v926 = vand.u32 %v925, 4294901760
    %v927 = vsub.f32 %v925, %v926
    %v928 = vand.u32 %v927, 4294901760
    %929 = vmatmul.f32.gmra.mxu0 %v928
    %v930 = vpop.f32.mrf.mxu0
    %v931 = vadd.f32 0.0, %v930
    %v932 = vand.u32 %v839, 4294901760
    %v933 = vsub.f32 %v839, %v932
    %v934 = vand.u32 %v933, 4294901760
    %v935 = vsub.f32 %v933, %v934
    %v936 = vand.u32 %v935, 4294901760
    %937 = vmatmul.f32.gmra.mxu0 %v936
    %v938 = vpop.f32.mrf.mxu0
    %v939 = vadd.f32 0.0, %v938
    %v940 = vand.u32 %v842, 4294901760
    %v941 = vsub.f32 %v842, %v940
    %v942 = vand.u32 %v941, 4294901760
    %v943 = vsub.f32 %v941, %v942
    %v944 = vand.u32 %v943, 4294901760
    %945 = vmatmul.f32.gmra.mxu0 %v944
    %v946 = vpop.f32.mrf.mxu0
    %v947 = vadd.f32 0.0, %v946
    %v948 = vand.u32 %v845, 4294901760
    %v949 = vsub.f32 %v845, %v948
    %v950 = vand.u32 %v949, 4294901760
    %v951 = vsub.f32 %v949, %v950
    %v952 = vand.u32 %v951, 4294901760
    %953 = vmatmul.f32.gmra.mxu0 %v952
    %v954 = vpop.f32.mrf.mxu0
    %v955 = vadd.f32 0.0, %v954
    %v956 = vand.u32 %v848, 4294901760
    %v957 = vsub.f32 %v848, %v956
    %v958 = vand.u32 %v957, 4294901760
    %v959 = vsub.f32 %v957, %v958
    %v960 = vand.u32 %v959, 4294901760
    %961 = vmatmul.f32.gmra.mxu0 %v960
    %v962 = vpop.f32.mrf.mxu0
    %v963 = vadd.f32 0.0, %v962
    %964 = vdwg.mxu0
    %965 = vmatpush.msra.mxu0 0.0
    %966 = vmatpush.msra.mxu0 0.0
    %967 = vmatpush.msra.mxu0 0.0
    %968 = vmatpush.msra.mxu0 0.0
    %969 = vmatpush.msra.mxu0 0.0
    %970 = vmatpush.msra.mxu0 0.0
    %971 = vmatpush.msra.mxu0 0.0
    %972 = vmatpush.msra.mxu0 0.0
    %973 = vmatpush.msra.mxu0 0.0
    %974 = vmatpush.msra.mxu0 0.0
    %975 = vmatpush.msra.mxu0 0.0
    %976 = vmatpush.msra.mxu0 0.0
    %977 = vmatpush.msra.mxu0 0.0
    %978 = vmatpush.msra.mxu0 0.0
    %v979 = vand.u32 %v813, 4294901760
    %v980 = vsub.f32 %v813, %v979
    %v981 = vand.u32 %v980, 4294901760
    %v982 = vsub.f32 %v980, %v981
    %v983 = vand.u32 %v982, 4294901760
    %984 = vmatpush.msra.mxu0 %v983
    %v985 = vand.u32 %v812, 4294901760
    %v986 = vsub.f32 %v812, %v985
    %v987 = vand.u32 %v986, 4294901760
    %v988 = vsub.f32 %v986, %v987
    %v989 = vand.u32 %v988, 4294901760
    %990 = vmatpush.msra.mxu0 %v989
    %v991 = vand.u32 %v815, 4294901760
    %992 = vmatmul.f32.gmra.mxu0 %v991
    %v993 = vpop.f32.mrf.mxu0
    %v994 = vadd.f32 %v875, %v993
    %v995 = vand.u32 %v818, 4294901760
    %996 = vmatmul.f32.gmra.mxu0 %v995
    %v997 = vpop.f32.mrf.mxu0
    %v998 = vadd.f32 %v883, %v997
    %v999 = vand.u32 %v821, 4294901760
    %1000 = vmatmul.f32.gmra.mxu0 %v999
    %v1001 = vpop.f32.mrf.mxu0
    %v1002 = vadd.f32 %v891, %v1001
    %v1003 = vand.u32 %v824, 4294901760
    %1004 = vmatmul.f32.gmra.mxu0 %v1003
    %v1005 = vpop.f32.mrf.mxu0
    %v1006 = vadd.f32 %v899, %v1005
    %v1007 = vand.u32 %v827, 4294901760
    %1008 = vmatmul.f32.gmra.mxu0 %v1007
    %v1009 = vpop.f32.mrf.mxu0
    %v1010 = vadd.f32 %v907, %v1009
    %v1011 = vand.u32 %v830, 4294901760
    %1012 = vmatmul.f32.gmra.mxu0 %v1011
    %v1013 = vpop.f32.mrf.mxu0
    %v1014 = vadd.f32 %v915, %v1013
    %v1015 = vand.u32 %v833, 4294901760
    %1016 = vmatmul.f32.gmra.mxu0 %v1015
    %v1017 = vpop.f32.mrf.mxu0
    %v1018 = vadd.f32 %v923, %v1017
    %v1019 = vand.u32 %v836, 4294901760
    %1020 = vmatmul.f32.gmra.mxu0 %v1019
    %v1021 = vpop.f32.mrf.mxu0
    %v1022 = vadd.f32 %v931, %v1021
    %v1023 = vand.u32 %v839, 4294901760
    %1024 = vmatmul.f32.gmra.mxu0 %v1023
    %v1025 = vpop.f32.mrf.mxu0
    %v1026 = vadd.f32 %v939, %v1025
    %v1027 = vand.u32 %v842, 4294901760
    %1028 = vmatmul.f32.gmra.mxu0 %v1027
    %v1029 = vpop.f32.mrf.mxu0
    %v1030 = vadd.f32 %v947, %v1029
    %v1031 = vand.u32 %v845, 4294901760
    %1032 = vmatmul.f32.gmra.mxu0 %v1031
    %v1033 = vpop.f32.mrf.mxu0
    %v1034 = vadd.f32 %v955, %v1033
    %v1035 = vand.u32 %v848, 4294901760
    %1036 = vmatmul.f32.gmra.mxu0 %v1035
    %v1037 = vpop.f32.mrf.mxu0
    %v1038 = vadd.f32 %v963, %v1037
    %1039 = vdwg.mxu0
    %1040 = vmatpush.msra.mxu0 0.0
    %1041 = vmatpush.msra.mxu0 0.0
    %1042 = vmatpush.msra.mxu0 0.0
    %1043 = vmatpush.msra.mxu0 0.0
    %1044 = vmatpush.msra.mxu0 0.0
    %1045 = vmatpush.msra.mxu0 0.0
    %1046 = vmatpush.msra.mxu0 0.0
    %1047 = vmatpush.msra.mxu0 0.0
    %1048 = vmatpush.msra.mxu0 0.0
    %1049 = vmatpush.msra.mxu0 0.0
    %1050 = vmatpush.msra.mxu0 0.0
    %1051 = vmatpush.msra.mxu0 0.0
    %1052 = vmatpush.msra.mxu0 0.0
    %1053 = vmatpush.msra.mxu0 0.0
    %v1054 = vand.u32 %v813, 4294901760
    %v1055 = vsub.f32 %v813, %v1054
    %1056 = vmatpush.msra.mxu0 %v1055
    %v1057 = vand.u32 %v812, 4294901760
    %v1058 = vsub.f32 %v812, %v1057
    %1059 = vmatpush.msra.mxu0 %v1058
    %v1060 = vand.u32 %v815, 4294901760
    %v1061 = vsub.f32 %v815, %v1060
    %1062 = vmatmul.f32.gmra.mxu0 %v1061
    %v1063 = vpop.f32.mrf.mxu0
    %v1064 = vadd.f32 %v994, %v1063
    %v1065 = vand.u32 %v818, 4294901760
    %v1066 = vsub.f32 %v818, %v1065
    %1067 = vmatmul.f32.gmra.mxu0 %v1066
    %v1068 = vpop.f32.mrf.mxu0
    %v1069 = vadd.f32 %v998, %v1068
    %v1070 = vand.u32 %v821, 4294901760
    %v1071 = vsub.f32 %v821, %v1070
    %1072 = vmatmul.f32.gmra.mxu0 %v1071
    %v1073 = vpop.f32.mrf.mxu0
    %v1074 = vadd.f32 %v1002, %v1073
    %v1075 = vand.u32 %v824, 4294901760
    %v1076 = vsub.f32 %v824, %v1075
    %1077 = vmatmul.f32.gmra.mxu0 %v1076
    %v1078 = vpop.f32.mrf.mxu0
    %v1079 = vadd.f32 %v1006, %v1078
    %v1080 = vand.u32 %v827, 4294901760
    %v1081 = vsub.f32 %v827, %v1080
    %1082 = vmatmul.f32.gmra.mxu0 %v1081
    %v1083 = vpop.f32.mrf.mxu0
    %v1084 = vadd.f32 %v1010, %v1083
    %v1085 = vand.u32 %v830, 4294901760
    %v1086 = vsub.f32 %v830, %v1085
    %1087 = vmatmul.f32.gmra.mxu0 %v1086
    %v1088 = vpop.f32.mrf.mxu0
    %v1089 = vadd.f32 %v1014, %v1088
    %v1090 = vand.u32 %v833, 4294901760
    %v1091 = vsub.f32 %v833, %v1090
    %1092 = vmatmul.f32.gmra.mxu0 %v1091
    %v1093 = vpop.f32.mrf.mxu0
    %v1094 = vadd.f32 %v1018, %v1093
    %v1095 = vand.u32 %v836, 4294901760
    %v1096 = vsub.f32 %v836, %v1095
    %1097 = vmatmul.f32.gmra.mxu0 %v1096
    %v1098 = vpop.f32.mrf.mxu0
    %v1099 = vadd.f32 %v1022, %v1098
    %v1100 = vand.u32 %v839, 4294901760
    %v1101 = vsub.f32 %v839, %v1100
    %1102 = vmatmul.f32.gmra.mxu0 %v1101
    %v1103 = vpop.f32.mrf.mxu0
    %v1104 = vadd.f32 %v1026, %v1103
    %v1105 = vand.u32 %v842, 4294901760
    %v1106 = vsub.f32 %v842, %v1105
    %1107 = vmatmul.f32.gmra.mxu0 %v1106
    %v1108 = vpop.f32.mrf.mxu0
    %v1109 = vadd.f32 %v1030, %v1108
    %v1110 = vand.u32 %v845, 4294901760
    %v1111 = vsub.f32 %v845, %v1110
    %1112 = vmatmul.f32.gmra.mxu0 %v1111
    %v1113 = vpop.f32.mrf.mxu0
    %v1114 = vadd.f32 %v1034, %v1113
    %v1115 = vand.u32 %v848, 4294901760
    %v1116 = vsub.f32 %v848, %v1115
    %1117 = vmatmul.f32.gmra.mxu0 %v1116
    %v1118 = vpop.f32.mrf.mxu0
    %v1119 = vadd.f32 %v1038, %v1118
    %1120 = vdwg.mxu0
    %1121 = vmatpush.msra.mxu0 0.0
    %1122 = vmatpush.msra.mxu0 0.0
    %1123 = vmatpush.msra.mxu0 0.0
    %1124 = vmatpush.msra.mxu0 0.0
    %1125 = vmatpush.msra.mxu0 0.0
    %1126 = vmatpush.msra.mxu0 0.0
    %1127 = vmatpush.msra.mxu0 0.0
    %1128 = vmatpush.msra.mxu0 0.0
    %1129 = vmatpush.msra.mxu0 0.0
    %1130 = vmatpush.msra.mxu0 0.0
    %1131 = vmatpush.msra.mxu0 0.0
    %1132 = vmatpush.msra.mxu0 0.0
    %1133 = vmatpush.msra.mxu0 0.0
    %1134 = vmatpush.msra.mxu0 0.0
    %v1135 = vand.u32 %v813, 4294901760
    %1136 = vmatpush.msra.mxu0 %v1135
    %v1137 = vand.u32 %v812, 4294901760
    %1138 = vmatpush.msra.mxu0 %v1137
    %v1139 = vand.u32 %v815, 4294901760
    %v1140 = vsub.f32 %v815, %v1139
    %v1141 = vand.u32 %v1140, 4294901760
    %1142 = vmatmul.f32.gmra.mxu0 %v1141
    %v1143 = vpop.f32.mrf.mxu0
    %v1144 = vadd.f32 %v1064, %v1143
    %v1145 = vand.u32 %v818, 4294901760
    %v1146 = vsub.f32 %v818, %v1145
    %v1147 = vand.u32 %v1146, 4294901760
    %1148 = vmatmul.f32.gmra.mxu0 %v1147
    %v1149 = vpop.f32.mrf.mxu0
    %v1150 = vadd.f32 %v1069, %v1149
    %v1151 = vand.u32 %v821, 4294901760
    %v1152 = vsub.f32 %v821, %v1151
    %v1153 = vand.u32 %v1152, 4294901760
    %1154 = vmatmul.f32.gmra.mxu0 %v1153
    %v1155 = vpop.f32.mrf.mxu0
    %v1156 = vadd.f32 %v1074, %v1155
    %v1157 = vand.u32 %v824, 4294901760
    %v1158 = vsub.f32 %v824, %v1157
    %v1159 = vand.u32 %v1158, 4294901760
    %1160 = vmatmul.f32.gmra.mxu0 %v1159
    %v1161 = vpop.f32.mrf.mxu0
    %v1162 = vadd.f32 %v1079, %v1161
    %v1163 = vand.u32 %v827, 4294901760
    %v1164 = vsub.f32 %v827, %v1163
    %v1165 = vand.u32 %v1164, 4294901760
    %1166 = vmatmul.f32.gmra.mxu0 %v1165
    %v1167 = vpop.f32.mrf.mxu0
    %v1168 = vadd.f32 %v1084, %v1167
    %v1169 = vand.u32 %v830, 4294901760
    %v1170 = vsub.f32 %v830, %v1169
    %v1171 = vand.u32 %v1170, 4294901760
    %1172 = vmatmul.f32.gmra.mxu0 %v1171
    %v1173 = vpop.f32.mrf.mxu0
    %v1174 = vadd.f32 %v1089, %v1173
    %v1175 = vand.u32 %v833, 4294901760
    %v1176 = vsub.f32 %v833, %v1175
    %v1177 = vand.u32 %v1176, 4294901760
    %1178 = vmatmul.f32.gmra.mxu0 %v1177
    %v1179 = vpop.f32.mrf.mxu0
    %v1180 = vadd.f32 %v1094, %v1179
    %v1181 = vand.u32 %v836, 4294901760
    %v1182 = vsub.f32 %v836, %v1181
    %v1183 = vand.u32 %v1182, 4294901760
    %1184 = vmatmul.f32.gmra.mxu0 %v1183
    %v1185 = vpop.f32.mrf.mxu0
    %v1186 = vadd.f32 %v1099, %v1185
    %v1187 = vand.u32 %v839, 4294901760
    %v1188 = vsub.f32 %v839, %v1187
    %v1189 = vand.u32 %v1188, 4294901760
    %1190 = vmatmul.f32.gmra.mxu0 %v1189
    %v1191 = vpop.f32.mrf.mxu0
    %v1192 = vadd.f32 %v1104, %v1191
    %v1193 = vand.u32 %v842, 4294901760
    %v1194 = vsub.f32 %v842, %v1193
    %v1195 = vand.u32 %v1194, 4294901760
    %1196 = vmatmul.f32.gmra.mxu0 %v1195
    %v1197 = vpop.f32.mrf.mxu0
    %v1198 = vadd.f32 %v1109, %v1197
    %v1199 = vand.u32 %v845, 4294901760
    %v1200 = vsub.f32 %v845, %v1199
    %v1201 = vand.u32 %v1200, 4294901760
    %1202 = vmatmul.f32.gmra.mxu0 %v1201
    %v1203 = vpop.f32.mrf.mxu0
    %v1204 = vadd.f32 %v1114, %v1203
    %v1205 = vand.u32 %v848, 4294901760
    %v1206 = vsub.f32 %v848, %v1205
    %v1207 = vand.u32 %v1206, 4294901760
    %1208 = vmatmul.f32.gmra.mxu0 %v1207
    %v1209 = vpop.f32.mrf.mxu0
    %v1210 = vadd.f32 %v1119, %v1209
    %1211 = vdwg.mxu0
    %1212 = vmatpush.msra.mxu0 0.0
    %1213 = vmatpush.msra.mxu0 0.0
    %1214 = vmatpush.msra.mxu0 0.0
    %1215 = vmatpush.msra.mxu0 0.0
    %1216 = vmatpush.msra.mxu0 0.0
    %1217 = vmatpush.msra.mxu0 0.0
    %1218 = vmatpush.msra.mxu0 0.0
    %1219 = vmatpush.msra.mxu0 0.0
    %1220 = vmatpush.msra.mxu0 0.0
    %1221 = vmatpush.msra.mxu0 0.0
    %1222 = vmatpush.msra.mxu0 0.0
    %1223 = vmatpush.msra.mxu0 0.0
    %1224 = vmatpush.msra.mxu0 0.0
    %1225 = vmatpush.msra.mxu0 0.0
    %v1226 = vand.u32 %v813, 4294901760
    %v1227 = vsub.f32 %v813, %v1226
    %v1228 = vand.u32 %v1227, 4294901760
    %1229 = vmatpush.msra.mxu0 %v1228
    %v1230 = vand.u32 %v812, 4294901760
    %v1231 = vsub.f32 %v812, %v1230
    %v1232 = vand.u32 %v1231, 4294901760
    %1233 = vmatpush.msra.mxu0 %v1232
    %v1234 = vand.u32 %v815, 4294901760
    %1235 = vmatmul.f32.gmra.mxu0 %v1234
    %v1236 = vpop.f32.mrf.mxu0
    %v1237 = vadd.f32 %v1144, %v1236
    %v1238 = vand.u32 %v818, 4294901760
    %1239 = vmatmul.f32.gmra.mxu0 %v1238
    %v1240 = vpop.f32.mrf.mxu0
    %v1241 = vadd.f32 %v1150, %v1240
    %v1242 = vand.u32 %v821, 4294901760
    %1243 = vmatmul.f32.gmra.mxu0 %v1242
    %v1244 = vpop.f32.mrf.mxu0
    %v1245 = vadd.f32 %v1156, %v1244
    %v1246 = vand.u32 %v824, 4294901760
    %1247 = vmatmul.f32.gmra.mxu0 %v1246
    %v1248 = vpop.f32.mrf.mxu0
    %v1249 = vadd.f32 %v1162, %v1248
    %v1250 = vand.u32 %v827, 4294901760
    %1251 = vmatmul.f32.gmra.mxu0 %v1250
    %v1252 = vpop.f32.mrf.mxu0
    %v1253 = vadd.f32 %v1168, %v1252
    %v1254 = vand.u32 %v830, 4294901760
    %1255 = vmatmul.f32.gmra.mxu0 %v1254
    %v1256 = vpop.f32.mrf.mxu0
    %v1257 = vadd.f32 %v1174, %v1256
    %v1258 = vand.u32 %v833, 4294901760
    %1259 = vmatmul.f32.gmra.mxu0 %v1258
    %v1260 = vpop.f32.mrf.mxu0
    %v1261 = vadd.f32 %v1180, %v1260
    %v1262 = vand.u32 %v836, 4294901760
    %1263 = vmatmul.f32.gmra.mxu0 %v1262
    %v1264 = vpop.f32.mrf.mxu0
    %v1265 = vadd.f32 %v1186, %v1264
    %v1266 = vand.u32 %v839, 4294901760
    %1267 = vmatmul.f32.gmra.mxu0 %v1266
    %v1268 = vpop.f32.mrf.mxu0
    %v1269 = vadd.f32 %v1192, %v1268
    %v1270 = vand.u32 %v842, 4294901760
    %1271 = vmatmul.f32.gmra.mxu0 %v1270
    %v1272 = vpop.f32.mrf.mxu0
    %v1273 = vadd.f32 %v1198, %v1272
    %v1274 = vand.u32 %v845, 4294901760
    %1275 = vmatmul.f32.gmra.mxu0 %v1274
    %v1276 = vpop.f32.mrf.mxu0
    %v1277 = vadd.f32 %v1204, %v1276
    %v1278 = vand.u32 %v848, 4294901760
    %1279 = vmatmul.f32.gmra.mxu0 %v1278
    %v1280 = vpop.f32.mrf.mxu0
    %v1281 = vadd.f32 %v1210, %v1280
    %1282 = vdwg.mxu0
    %1283 = vmatpush.msra.mxu0 0.0
    %1284 = vmatpush.msra.mxu0 0.0
    %1285 = vmatpush.msra.mxu0 0.0
    %1286 = vmatpush.msra.mxu0 0.0
    %1287 = vmatpush.msra.mxu0 0.0
    %1288 = vmatpush.msra.mxu0 0.0
    %1289 = vmatpush.msra.mxu0 0.0
    %1290 = vmatpush.msra.mxu0 0.0
    %1291 = vmatpush.msra.mxu0 0.0
    %1292 = vmatpush.msra.mxu0 0.0
    %1293 = vmatpush.msra.mxu0 0.0
    %1294 = vmatpush.msra.mxu0 0.0
    %1295 = vmatpush.msra.mxu0 0.0
    %1296 = vmatpush.msra.mxu0 0.0
    %v1297 = vand.u32 %v813, 4294901760
    %1298 = vmatpush.msra.mxu0 %v1297
    %v1299 = vand.u32 %v812, 4294901760
    %1300 = vmatpush.msra.mxu0 %v1299
    %v1301 = vand.u32 %v815, 4294901760
    %1302 = vmatmul.f32.gmra.mxu0 %v1301
    %v1303 = vpop.f32.mrf.mxu0
    %v1304 = vadd.f32 %v1237, %v1303
    %v1305 = vand.u32 %v818, 4294901760
    %1306 = vmatmul.f32.gmra.mxu0 %v1305
    %v1307 = vpop.f32.mrf.mxu0
    %v1308 = vadd.f32 %v1241, %v1307
    %v1309 = vand.u32 %v821, 4294901760
    %1310 = vmatmul.f32.gmra.mxu0 %v1309
    %v1311 = vpop.f32.mrf.mxu0
    %v1312 = vadd.f32 %v1245, %v1311
    %v1313 = vand.u32 %v824, 4294901760
    %1314 = vmatmul.f32.gmra.mxu0 %v1313
    %v1315 = vpop.f32.mrf.mxu0
    %v1316 = vadd.f32 %v1249, %v1315
    %v1317 = vand.u32 %v827, 4294901760
    %1318 = vmatmul.f32.gmra.mxu0 %v1317
    %v1319 = vpop.f32.mrf.mxu0
    %v1320 = vadd.f32 %v1253, %v1319
    %v1321 = vand.u32 %v830, 4294901760
    %1322 = vmatmul.f32.gmra.mxu0 %v1321
    %v1323 = vpop.f32.mrf.mxu0
    %v1324 = vadd.f32 %v1257, %v1323
    %v1325 = vand.u32 %v833, 4294901760
    %1326 = vmatmul.f32.gmra.mxu0 %v1325
    %v1327 = vpop.f32.mrf.mxu0
    %v1328 = vadd.f32 %v1261, %v1327
    %v1329 = vand.u32 %v836, 4294901760
    %1330 = vmatmul.f32.gmra.mxu0 %v1329
    %v1331 = vpop.f32.mrf.mxu0
    %v1332 = vadd.f32 %v1265, %v1331
    %v1333 = vand.u32 %v839, 4294901760
    %1334 = vmatmul.f32.gmra.mxu0 %v1333
    %v1335 = vpop.f32.mrf.mxu0
    %v1336 = vadd.f32 %v1269, %v1335
    %v1337 = vand.u32 %v842, 4294901760
    %1338 = vmatmul.f32.gmra.mxu0 %v1337
    %v1339 = vpop.f32.mrf.mxu0
    %v1340 = vadd.f32 %v1273, %v1339
    %v1341 = vand.u32 %v845, 4294901760
    %1342 = vmatmul.f32.gmra.mxu0 %v1341
    %v1343 = vpop.f32.mrf.mxu0
    %v1344 = vadd.f32 %v1277, %v1343
    %v1345 = vand.u32 %v848, 4294901760
    %1346 = vmatmul.f32.gmra.mxu0 %v1345
    %v1347 = vpop.f32.mrf.mxu0
    %v1348 = vadd.f32 %v1281, %v1347
    %1349 = vdwg.mxu0
    %v1350 = vand.u32 2147483647, %v766
    %v1351 = vand.u32 2147483647, %v770
    %v1352 = vand.u32 2147483647, %v774
    %v1353 = vand.u32 2147483647, %v778
    %v1354 = vand.u32 2147483647, %v782
    %v1355 = vand.u32 2147483647, %v786
    %v1356 = vand.u32 2147483647, %v790
    %v1357 = vand.u32 2147483647, %v794
    %v1358 = vand.u32 2147483647, %v798
    %v1359 = vand.u32 2147483647, %v802
    %v1360 = vand.u32 2147483647, %v806
    %v1361 = vand.u32 2147483647, %v810
    %v1362 = vand.u32 2147483647, %v1304
    %v1363 = vand.u32 2147483647, %v1308
    %v1364 = vand.u32 2147483647, %v1312
    %v1365 = vand.u32 2147483647, %v1316
    %v1366 = vand.u32 2147483647, %v1320
    %v1367 = vand.u32 2147483647, %v1324
    %v1368 = vand.u32 2147483647, %v1328
    %v1369 = vand.u32 2147483647, %v1332
    %v1370 = vand.u32 2147483647, %v1336
    %v1371 = vand.u32 2147483647, %v1340
    %v1372 = vand.u32 2147483647, %v1344
    %v1373 = vand.u32 2147483647, %v1348
    %v1374 = vadd.f32 %v1350, %v1362
    %v1375 = vadd.f32 %v1351, %v1363
    %v1376 = vadd.f32 %v1352, %v1364
    %v1377 = vadd.f32 %v1353, %v1365
    %v1378 = vadd.f32 %v1354, %v1366
    %v1379 = vadd.f32 %v1355, %v1367
    %v1380 = vadd.f32 %v1356, %v1368
    %v1381 = vadd.f32 %v1357, %v1369
    %v1382 = vadd.f32 %v1358, %v1370
    %v1383 = vadd.f32 %v1359, %v1371
    %v1384 = vadd.f32 %v1360, %v1372
    %v1385 = vadd.f32 %v1361, %v1373
    %v1386 = vsel %vm275, %v1374, 0.0
    %v1387 = vsel %vm275, %v1375, 0.0
    %v1388 = vadd.f32 %v1386, %v1387
    %v1389 = vsel %vm275, %v1376, 0.0
    %v1390 = vadd.f32 %v1388, %v1389
    %v1391 = vsel %vm275, %v1377, 0.0
    %v1392 = vadd.f32 %v1390, %v1391
    %v1393 = vsel %vm275, %v1378, 0.0
    %v1394 = vadd.f32 %v1392, %v1393
    %v1395 = vsel %vm275, %v1379, 0.0
    %v1396 = vadd.f32 %v1394, %v1395
    %v1397 = vsel %vm275, %v1380, 0.0
    %v1398 = vadd.f32 %v1396, %v1397
    %v1399 = vsel %vm275, %v1381, 0.0
    %v1400 = vadd.f32 %v1398, %v1399
    %v1401 = vsel %vm275, %v1382, 0.0
    %v1402 = vadd.f32 %v1400, %v1401
    %v1403 = vsel %vm275, %v1383, 0.0
    %v1404 = vadd.f32 %v1402, %v1403
    %v1405 = vsel %vm275, %v1384, 0.0
    %v1406 = vadd.f32 %v1404, %v1405
    %v1407 = vsel %vm275, %v1385, 0.0
    %v1408 = vadd.f32 %v1406, %v1407
    %1409 = vadd.xlane.f32.xlu0 %v1408
    %v1410 = vpop.xlane.xlu0 %1409
    %v1411 = vrot.slane %v1410, 4
    %v1412 = vadd.f32 %v1410, %v1411
    %v1413 = vrot.slane %v1412, 2
    %v1414 = vadd.f32 %v1412, %v1413
    %v1415 = vrot.slane %v1414, 1
    %v1416 = vadd.f32 %v1414, %v1415
    %s1417 = vtos %v1416
    %s1418 = scalar_lea.smem [#allocation2], 0
    %1419 = sst [smem:[%s1418]] %s1417
    // Predicated region
    $region18: #{tpu_custom_call.1} parent=1 // pred_check
      _
    $region19: #{tpu_custom_call.1} parent=1 // pred_check_branch
      %1421 = sbr.rel (0) target = $region21
    $region20: #{tpu_custom_call.1} parent=1 // pred_region
      %1423 = vsyncadd [#allocation3], 0
      %s1425 = sshll.u32 %s4, 4
      %s1426 = int_to_ptr.hbm [resolvable:$true] %s1425
      %1428 = dma.smem_to_hbm [#allocation2], 16, %s1426, [#allocation3]
    $region21: #{tpu_custom_call.1} parent=1 // pred_fallthru
      _
    // Predicated region
    $region22: #{tpu_custom_call.1} parent=1 // pred_check
      _
    $region23: #{tpu_custom_call.1} parent=1 // pred_check_branch
      %1430 = sbr.rel (0) target = $region25
    $region24: #{tpu_custom_call.1} parent=1 // pred_region
      %1432 = dma.done [#allocation3], 16
    $region25: #{tpu_custom_call.1} parent=1 // pred_fallthru
      _
    %1433 = sfence
    %1434 = vsyncpa [#allocation3], 1

</llo_original>
